<compile_context>
chip_gen: v7x
topology: tpu7x:2x2x1
jax: 0.10.0
libtpu: 0.0.40
codegen_flags: <defaults>
</compile_context>

<pallas_src>
import functools

import jax
import jax.numpy as jnp
from jax.experimental import pallas as pl
from jax.experimental.pallas import tpu as pltpu


def _fused_mlp_kernel(x_ref, *refs, num_layers, chunk):
    """Fused MLP body.

    refs = (w_0, b_0, ..., w_{L-2}, b_{L-2}, w_last_T, b_last_T, o_ref)
      * hidden layers: w_i (d_in, d_out), b_i (1, d_out)   -> h = relu(h @ w + b)
      * final layer (pre-transposed by the wrapper):
            w_last_T (dim_target, d_last), b_last_T (dim_target, 1)
        computed as  out_T = w_last_T @ h.T + b_last_T  so the store into the
        (dim_target, tile_b) output block is lane-dense (unmasked vst).
    Dropout is eval-mode identity.
    """
    o_ref = refs[-1]
    layer_refs = refs[:-1]

    # Hoist the (tiny) weight/bias loads out of the chunk loop.
    ws = [layer_refs[2 * i][...] for i in range(num_layers)]
    bs = [layer_refs[2 * i + 1][...] for i in range(num_layers)]

    tile_b = x_ref.shape[0]
    num_chunks = tile_b // chunk          # wrapper guarantees divisibility

    for c in range(num_chunks):           # static unroll, static slices
        lo, hi = c * chunk, (c + 1) * chunk
        # TODO(synk): training-mode dropout not implemented (eval-mode identity).
        h = x_ref[lo:hi, :].astype(jnp.float32)
        for i in range(num_layers - 1):
            h = jnp.dot(h, ws[i], preferred_element_type=jnp.float32) + bs[i]
            h = jnp.maximum(h, 0.0)
        # Final layer, transposed: (dim_target, d_last) @ (d_last, chunk).
        out_t = jnp.dot(ws[-1], h.T, preferred_element_type=jnp.float32) + bs[-1]
        o_ref[:, lo:hi] = out_t.astype(o_ref.dtype)


def get_acc_forward(h, params, *, tile_b=16384, chunk=512):
    """GetAcc.forward in eval mode, as one fused Pallas call.

    h:      (batch, gdim) activations (f32 or bf16).
    params: list of (w, b) with w (d_in, d_out), b (1, d_out), as in init_params.
    Returns (batch, dim_target).
    """
    batch, gdim = h.shape
    num_layers = len(params)
    w_last, b_last = params[-1]
    dim_target = w_last.shape[1]
    out_dtype = jnp.promote_types(h.dtype, w_last.dtype)

    # --- tile / chunk selection ------------------------------------------
    if batch <= tile_b:
        # Single block covering the whole array -> no alignment constraint.
        tile_b = batch
    else:
        # Multi-block: keep the block lane/sublane aligned (128 | tile_b).
        tile_b = max(128, (tile_b // 128) * 128)
    grid = (pl.cdiv(batch, tile_b),)      # ragged last block handled by Pallas
    if tile_b <= chunk or tile_b % chunk != 0:
        chunk = tile_b

    # --- specs -------------------------------------------------------------
    in_specs = [pl.BlockSpec((tile_b, gdim), lambda i: (i, 0))]
    flat_params = [h]
    for w, b in params[:-1]:
        in_specs.append(pl.BlockSpec(w.shape, lambda i: (0, 0)))
        in_specs.append(pl.BlockSpec(b.shape, lambda i: (0, 0)))
        flat_params.extend((w, b))
    # Final layer pre-transposed so the kernel emits a lane-dense output block.
    w_last_t = w_last.T                       # (dim_target, d_last)
    b_last_t = b_last.T                       # (dim_target, 1)
    in_specs.append(pl.BlockSpec(w_last_t.shape, lambda i: (0, 0)))
    in_specs.append(pl.BlockSpec(b_last_t.shape, lambda i: (0, 0)))
    flat_params.extend((w_last_t, b_last_t))

    # Lane-dense output: (dim_target, batch), batch on the 128-lane axis.
    out_spec = pl.BlockSpec((dim_target, tile_b), lambda i: (0, i))

    kernel = functools.partial(_fused_mlp_kernel, num_layers=num_layers, chunk=chunk)
    out_t = pl.pallas_call(
        kernel,
        out_shape=jax.ShapeDtypeStruct((dim_target, batch), out_dtype),
        grid=grid,
        in_specs=in_specs,
        out_specs=out_spec,
        compiler_params=pltpu.CompilerParams(
            dimension_semantics=("parallel",),
            # tile_b=16384: ~16 MiB double-buffered input + ~1 MiB output +
            # chunk scratch; 40 MiB leaves headroom and stays under v7x's
            # 64 MiB physical VMEM.
            vmem_limit_bytes=40 * 1024 * 1024,
        ),
    )(*flat_params)

    return out_t.T                            # (batch, dim_target)


def init_params(key, gdim, num_layers, dim_target, dtype=jnp.float32):
    """Deterministic synthetic params matching GetAcc.__init__ shapes.

    Layer dims: gdim//2**k -> gdim//2**(k+1) for k in [0, num_layers-2],
    then gdim//2**(num_layers-1) -> dim_target.
    Weights stored as (in, out) so the kernel computes x @ W + b.
    """
    dims_in = [gdim // 2**k for k in range(num_layers - 1)]
    dims_out = [gdim // 2**(k + 1) for k in range(num_layers - 1)]
    dims_in.append(gdim // 2**(num_layers - 1))
    dims_out.append(dim_target)

    params = []
    for d_in, d_out in zip(dims_in, dims_out):
        key, kw, kb = jax.random.split(key, 3)
        scale = 1.0 / jnp.sqrt(jnp.asarray(d_in, dtype))
        w = jax.random.uniform(kw, (d_in, d_out), dtype, -scale, scale)
        b = jax.random.uniform(kb, (1, d_out), dtype, -scale, scale)
        params.append((w, b))
    return params


def _reference(h, params):
    ref = h.astype(jnp.float32)
    for w, b in params[:-1]:
        ref = jnp.maximum(ref @ w + b, 0.0)
    return ref @ params[-1][0] + params[-1][1]


if __name__ == "__main__":
    # model_config: graph_embedding_dim=32, num_regression_layers=3, dropout=0.2
    gdim = 32
    num_layers = 3
    dim_target = 1

    key = jax.random.PRNGKey(0)
    key, kx = jax.random.split(key)
    params = init_params(key, gdim, num_layers, dim_target)

    # --- small single-block check -----------------------------------------
    batch = 8
    h = jax.random.normal(kx, (batch, gdim), jnp.float32)
    out = jax.block_until_ready(get_acc_forward(h, params))
    ref = _reference(h, params)
    assert out.shape == (batch, dim_target), out.shape
    assert jnp.allclose(out, ref, atol=1e-4, rtol=1e-4), "mismatch vs reference"

    # --- multi-block + ragged last block + in-kernel chunking check --------
    key, kx2 = jax.random.split(key)
    batch2 = 300
    h2 = jax.random.normal(kx2, (batch2, gdim), jnp.float32)
    out2 = jax.block_until_ready(get_acc_forward(h2, params, tile_b=128, chunk=64))
    ref2 = _reference(h2, params)
    assert out2.shape == (batch2, dim_target), out2.shape
    assert jnp.allclose(out2, ref2, atol=1e-4, rtol=1e-4), "mismatch (ragged path)"

    print("KERNEL_OK")
</pallas_src>

<mosaic_0001>
module attributes {stable_mosaic.version = 11 : i64} {
  func.func @_fused_mlp_kernel(%arg0: i32, %arg1: memref<8x32xf32, #tpu.memory_space<vmem>>, %arg2: memref<32x16xf32, #tpu.memory_space<vmem>>, %arg3: memref<1x16xf32, #tpu.memory_space<vmem>>, %arg4: memref<16x8xf32, #tpu.memory_space<vmem>>, %arg5: memref<1x8xf32, #tpu.memory_space<vmem>>, %arg6: memref<1x8xf32, #tpu.memory_space<vmem>>, %arg7: memref<1x1xf32, #tpu.memory_space<vmem>>, %arg8: memref<1x8xf32, #tpu.memory_space<vmem>>) attributes {dimension_semantics = [#tpu.dimension_semantics<parallel>], iteration_bounds = array<i64: 1>, scalar_prefetch = 0 : i64, scratch_operands = 0 : i64, tpu.core_type = #tpu.core_type<tc>, window_params = [{transform_indices = @transform_0, window_bounds = array<i64: 8, 32>}, {pipeline_mode = #tpu.pipeline_mode<synchronous>, transform_indices = @transform_1, window_bounds = array<i64: 32, 16>}, {pipeline_mode = #tpu.pipeline_mode<synchronous>, transform_indices = @transform_2, window_bounds = array<i64: 1, 16>}, {pipeline_mode = #tpu.pipeline_mode<synchronous>, transform_indices = @transform_3, window_bounds = array<i64: 16, 8>}, {pipeline_mode = #tpu.pipeline_mode<synchronous>, transform_indices = @transform_4, window_bounds = array<i64: 1, 8>}, {pipeline_mode = #tpu.pipeline_mode<synchronous>, transform_indices = @transform_5, window_bounds = array<i64: 1, 8>}, {pipeline_mode = #tpu.pipeline_mode<synchronous>, transform_indices = @transform_6, window_bounds = array<i64: 1, 1>}, {transform_indices = @transform_7, window_bounds = array<i64: 1, 8>}]} {
    %c0 = arith.constant 0 : index
    %c0_0 = arith.constant 0 : index
    %0 = vector.load %arg2[%c0, %c0_0] : memref<32x16xf32, #tpu.memory_space<vmem>>, vector<32x16xf32>
    %c0_1 = arith.constant 0 : index
    %c0_2 = arith.constant 0 : index
    %1 = vector.load %arg4[%c0_1, %c0_2] : memref<16x8xf32, #tpu.memory_space<vmem>>, vector<16x8xf32>
    %c0_3 = arith.constant 0 : index
    %c0_4 = arith.constant 0 : index
    %2 = vector.load %arg6[%c0_3, %c0_4] : memref<1x8xf32, #tpu.memory_space<vmem>>, vector<1x8xf32>
    %c0_5 = arith.constant 0 : index
    %c0_6 = arith.constant 0 : index
    %3 = vector.load %arg3[%c0_5, %c0_6] : memref<1x16xf32, #tpu.memory_space<vmem>>, vector<1x16xf32>
    %c0_7 = arith.constant 0 : index
    %c0_8 = arith.constant 0 : index
    %4 = vector.load %arg5[%c0_7, %c0_8] : memref<1x8xf32, #tpu.memory_space<vmem>>, vector<1x8xf32>
    %c0_9 = arith.constant 0 : index
    %c0_10 = arith.constant 0 : index
    %5 = vector.load %arg7[%c0_9, %c0_10] : memref<1x1xf32, #tpu.memory_space<vmem>>, vector<1x1xf32>
    %c0_11 = arith.constant 0 : index
    %c0_12 = arith.constant 0 : index
    %6 = vector.load %arg1[%c0_11, %c0_12] : memref<8x32xf32, #tpu.memory_space<vmem>>, vector<8x32xf32>
    %cst = arith.constant dense<0.000000e+00> : vector<8x16xf32>
    %7 = tpu.matmul %6, %0, %cst {dimension_numbers = #tpu.dot_dimension_numbers<[1], [0], [0], [1], [0, 0, 1, 1], [], []>} : vector<8x32xf32>, vector<32x16xf32>, vector<8x16xf32> -> vector<8x16xf32>
    %8 = vector.broadcast %3 : vector<1x16xf32> to vector<8x16xf32>
    %9 = arith.addf %7, %8 : vector<8x16xf32>
    %cst_13 = arith.constant 0.000000e+00 : f32
    %10 = vector.broadcast %cst_13 : f32 to vector<8x16xf32>
    %11 = arith.maximumf %9, %10 : vector<8x16xf32>
    %cst_14 = arith.constant dense<0.000000e+00> : vector<8x8xf32>
    %12 = tpu.matmul %11, %1, %cst_14 {dimension_numbers = #tpu.dot_dimension_numbers<[1], [0], [0], [1], [0, 0, 1, 1], [], []>} : vector<8x16xf32>, vector<16x8xf32>, vector<8x8xf32> -> vector<8x8xf32>
    %13 = vector.broadcast %4 : vector<1x8xf32> to vector<8x8xf32>
    %14 = arith.addf %12, %13 : vector<8x8xf32>
    %cst_15 = arith.constant 0.000000e+00 : f32
    %15 = vector.broadcast %cst_15 : f32 to vector<8x8xf32>
    %16 = arith.maximumf %14, %15 : vector<8x8xf32>
    %17 = tpu.transpose %16, [1, 0] : vector<8x8xf32> -> vector<8x8xf32>
    %cst_16 = arith.constant dense<0.000000e+00> : vector<1x8xf32>
    %18 = tpu.matmul %2, %17, %cst_16 {dimension_numbers = #tpu.dot_dimension_numbers<[1], [0], [0], [1], [0, 0, 1, 1], [], []>} : vector<1x8xf32>, vector<8x8xf32>, vector<1x8xf32> -> vector<1x8xf32>
    %19 = vector.broadcast %5 : vector<1x1xf32> to vector<1x8xf32>
    %20 = arith.addf %18, %19 : vector<1x8xf32>
    %c0_17 = arith.constant 0 : index
    %c0_18 = arith.constant 0 : index
    %21 = vector.load %arg8[%c0_17, %c0_18] : memref<1x8xf32, #tpu.memory_space<vmem>>, vector<1x8xf32>
    tpu.vector_store %arg8[%c0_17, %c0_18], %20 {strides = array<i32>} : memref<1x8xf32, #tpu.memory_space<vmem>>, vector<1x8xf32>,
    return
  }
  func.func @transform_0(%arg0: i32) -> (i32, i32) {
    %c0_i32 = arith.constant 0 : i32
    %c0_i32_0 = arith.constant 0 : i32
    return %arg0, %c0_i32 : i32, i32
  }
  func.func @transform_1(%arg0: i32) -> (i32, i32) {
    %c0_i32 = arith.constant 0 : i32
    %c0_i32_0 = arith.constant 0 : i32
    %c0_i32_1 = arith.constant 0 : i32
    return %c0_i32, %c0_i32_0 : i32, i32
  }
  func.func @transform_2(%arg0: i32) -> (i32, i32) {
    %c0_i32 = arith.constant 0 : i32
    %c0_i32_0 = arith.constant 0 : i32
    %c0_i32_1 = arith.constant 0 : i32
    return %c0_i32, %c0_i32_0 : i32, i32
  }
  func.func @transform_3(%arg0: i32) -> (i32, i32) {
    %c0_i32 = arith.constant 0 : i32
    %c0_i32_0 = arith.constant 0 : i32
    %c0_i32_1 = arith.constant 0 : i32
    return %c0_i32, %c0_i32_0 : i32, i32
  }
  func.func @transform_4(%arg0: i32) -> (i32, i32) {
    %c0_i32 = arith.constant 0 : i32
    %c0_i32_0 = arith.constant 0 : i32
    %c0_i32_1 = arith.constant 0 : i32
    return %c0_i32, %c0_i32_0 : i32, i32
  }
  func.func @transform_5(%arg0: i32) -> (i32, i32) {
    %c0_i32 = arith.constant 0 : i32
    %c0_i32_0 = arith.constant 0 : i32
    %c0_i32_1 = arith.constant 0 : i32
    return %c0_i32, %c0_i32_0 : i32, i32
  }
  func.func @transform_6(%arg0: i32) -> (i32, i32) {
    %c0_i32 = arith.constant 0 : i32
    %c0_i32_0 = arith.constant 0 : i32
    %c0_i32_1 = arith.constant 0 : i32
    return %c0_i32, %c0_i32_0 : i32, i32
  }
  func.func @transform_7(%arg0: i32) -> (i32, i32) {
    %c0_i32 = arith.constant 0 : i32
    %c0_i32_0 = arith.constant 0 : i32
    return %c0_i32, %arg0 : i32, i32
  }
}

</mosaic_0001>

<llo_original>
// kernel: tpu_custom_call.1
$region0: #{tpu_custom_call.1}
  #allocation0 [shape = 'u32[]', space=smem, size = 0x4, offset = 0x4, fixed_abs, tag = 'smem constant byte address 0x4 - core index']
  #allocation1 [shape = 'u32[144,128]{1,0:T(1,128)}', space=vmem, size = 0x12000, scoped, tag = 'internal scratch']
  #allocation2 [shape = 'f32[1,1]{1,0:T(1,128)S(1)}', space=vmem, size = 0x200, scoped, tag = 'scoped memory for tpu_custom_call.1']
  %s0 = inlined_call_operand.vmem [shape: f32[8,32], index: 0, kind: input, shape index: {}]
  %s1 = inlined_call_operand.vmem [shape: f32[32,16], index: 1, kind: input, shape index: {}]
  %s2 = inlined_call_operand.vmem [shape: f32[1,16], index: 2, kind: input, shape index: {}]
  %s3 = inlined_call_operand.vmem [shape: f32[16,8], index: 3, kind: input, shape index: {}]
  %s4 = inlined_call_operand.vmem [shape: f32[1,8], index: 4, kind: input, shape index: {}]
  %s5 = inlined_call_operand.vmem [shape: f32[1,8], index: 5, kind: input, shape index: {}]
  %s6 = inlined_call_operand.<no memory space> [shape: f32[1,1], index: 6, kind: input, shape index: {}]
  %s7 = inlined_call_operand.hbm [shape: f32[1,8], index: 7, kind: output, shape index: {}]
  %s8 = sld [smem:[#allocation0]]
  $region38: #{tpu_custom_call.1} parent=0
    _
  %s10 = ssub.s32 1, %s8
  %s11 = scalar_select 0, %s10, %s8
  %v12 = vstv %s6
  %13 = vst [vmem:[#allocation2] sm:$0x1] %v12
  $region1: #{tpu_custom_call.1} parent=0
    #allocation3 [shape = 'u8[512]{0}', space=vmem, size = 0x400, scoped, tag = 'output window, operand 0, single buffered']
    #allocation4 [shape = 's32[1]{0}', space=sflag, size = 0x4, scoped, tag = 'scoped memory for tpu_custom_call.1']
    %14 = vsyncpa [#allocation4], 0
    // Predicated region
    $region2: #{tpu_custom_call.1} parent=1 // pred_check
      _
    $region3: #{tpu_custom_call.1} parent=1 // pred_check_branch
      %16 = sbr.rel (0) target = $region5
    $region4: #{tpu_custom_call.1} parent=1 // pred_region
      _
    $region5: #{tpu_custom_call.1} parent=1 // pred_fallthru
      _
    // Predicated region
    $region6: #{tpu_custom_call.1} parent=1 // pred_check
      _
    $region7: #{tpu_custom_call.1} parent=1 // pred_check_branch
      %18 = sbr.rel (0) target = $region9
    $region8: #{tpu_custom_call.1} parent=1 // pred_region
      _
    $region9: #{tpu_custom_call.1} parent=1 // pred_fallthru
      _
    // Predicated region
    $region10: #{tpu_custom_call.1} parent=1 // pred_check
      _
    $region11: #{tpu_custom_call.1} parent=1 // pred_check_branch
      %20 = sbr.rel (0) target = $region13
    $region12: #{tpu_custom_call.1} parent=1 // pred_region
      _
    $region13: #{tpu_custom_call.1} parent=1 // pred_fallthru
      _
    // Predicated region
    $region14: #{tpu_custom_call.1} parent=1 // pred_check
      _
    $region15: #{tpu_custom_call.1} parent=1 // pred_check_branch
      %22 = sbr.rel (0) target = $region17
    $region16: #{tpu_custom_call.1} parent=1 // pred_region
      _
    $region17: #{tpu_custom_call.1} parent=1 // pred_fallthru
      _
    // Predicated region
    $region18: #{tpu_custom_call.1} parent=1 // pred_check
      _
    $region19: #{tpu_custom_call.1} parent=1 // pred_check_branch
      %24 = sbr.rel (0) target = $region21
    $region20: #{tpu_custom_call.1} parent=1 // pred_region
      _
    $region21: #{tpu_custom_call.1} parent=1 // pred_fallthru
      _
    // Predicated region
    $region22: #{tpu_custom_call.1} parent=1 // pred_check
      _
    $region23: #{tpu_custom_call.1} parent=1 // pred_check_branch
      %26 = sbr.rel (0) target = $region25
    $region24: #{tpu_custom_call.1} parent=1 // pred_region
      _
    $region25: #{tpu_custom_call.1} parent=1 // pred_fallthru
      _
    // Predicated region
    $region26: #{tpu_custom_call.1} parent=1 // pred_check
      _
    $region27: #{tpu_custom_call.1} parent=1 // pred_check_branch
      %28 = sbr.rel (0) target = $region29
    $region28: #{tpu_custom_call.1} parent=1 // pred_region
      _
    $region29: #{tpu_custom_call.1} parent=1 // pred_fallthru
      _
    %v29 = vld [vmem:[%s1] sm:$0xff]
    %v30 = vld [vmem:[%s1 + $0x8] sm:$0xff]
    %v31 = vld [vmem:[%s1 + $0x10] sm:$0xff]
    %v32 = vld [vmem:[%s1 + $0x18] sm:$0xff]
    %v33 = vld [vmem:[%s3] sm:$0xff]
    %v34 = vld [vmem:[%s3 + $0x8] sm:$0xff]
    %v35 = vld [vmem:[%s5] sm:$0x1]
    %v36 = vld [vmem:[%s2] sm:$0x1]
    %v37 = vld [vmem:[%s4] sm:$0x1]
    %v38 = vld [vmem:[#allocation2] sm:$0x1]
    %v39 = vld [vmem:[%s0] sm:$0xff]
    %v41 = vlaneseq
    %v42 = vshrl.u32 %v41, 7
    %v43 = vsub.s32 0, %v42
    %v44 = vrot.slane %v36, %v43
    %vm46 = vcmask 261120
    %v48 = vsel %vm46, %v39, 0
    %50 = vmatprep.subr.mxu0 0.0
    %51 = vmatpush1.msra.mxu0 %v29
    %52 = vmatprep.subr.mxu0 0.0
    %53 = vmatpush1.msra.mxu0 %v30
    %54 = vmatprep.subr.mxu0 0.0
    %55 = vmatpush1.msra.mxu0 %v31
    %56 = vmatprep.subr.mxu0 0.0
    %57 = vmatpush1.msra.mxu0 %v32
    %58 = vmatprep.subr.mxu0 0.0
    %59 = vmatpush1.msra.mxu0 0.0
    %60 = vmatprep.subr.mxu0 0.0
    %61 = vmatpush1.msra.mxu0 0.0
    %62 = vmatprep.subr.mxu0 0.0
    %63 = vmatpush1.msra.mxu0 0.0
    %64 = vmatprep.subr.mxu0 0.0
    %65 = vmatpush1.msra.mxu0 0.0
    %66 = vmatprep.subr.mxu0 0.0
    %67 = vmatpush1.msra.mxu0 0.0
    %68 = vmatprep.subr.mxu0 0.0
    %69 = vmatpush1.msra.mxu0 0.0
    %70 = vmatprep.subr.mxu0 0.0
    %71 = vmatpush1.msra.mxu0 0.0
    %72 = vmatprep.subr.mxu0 0.0
    %73 = vmatpush1.msra.mxu0 0.0
    %74 = vmatprep.subr.mxu0 0.0
    %75 = vmatpush1.msra.mxu0 0.0
    %76 = vmatprep.subr.mxu0 0.0
    %77 = vmatpush1.msra.mxu0 0.0
    %78 = vmatprep.subr.mxu0 0.0
    %79 = vmatpush1.msra.mxu0 0.0
    %80 = vmatprep.subr.mxu0 0.0
    %81 = vmatpush1.msra.mxu0 0.0
    %82 = vmatprep.subr.mxu0 0.0
    %83 = vmatpush1.msra.mxu0 0.0
    %84 = vmatprep.subr.mxu0 0.0
    %85 = vmatpush1.msra.mxu0 0.0
    %86 = vmatprep.subr.mxu0 0.0
    %87 = vmatpush1.msra.mxu0 0.0
    %88 = vmatprep.subr.mxu0 0.0
    %89 = vmatpush1.msra.mxu0 0.0
    %90 = vmatprep.subr.mxu0 0.0
    %91 = vmatpush1.msra.mxu0 0.0
    %92 = vmatprep.subr.mxu0 0.0
    %93 = vmatpush1.msra.mxu0 0.0
    %94 = vmatprep.subr.mxu0 0.0
    %95 = vmatpush1.msra.mxu0 0.0
    %96 = vmatprep.subr.mxu0 0.0
    %97 = vmatpush1.msra.mxu0 0.0
    %98 = vmatprep.subr.mxu0 0.0
    %99 = vmatpush1.msra.mxu0 0.0
    %100 = vmatprep.subr.mxu0 0.0
    %101 = vmatpush1.msra.mxu0 0.0
    %102 = vmatprep.subr.mxu0 0.0
    %103 = vmatpush1.msra.mxu0 0.0
    %104 = vmatprep.subr.mxu0 0.0
    %105 = vmatpush1.msra.mxu0 0.0
    %106 = vmatprep.subr.mxu0 0.0
    %107 = vmatpush1.msra.mxu0 0.0
    %108 = vmatprep.subr.mxu0 0.0
    %109 = vmatpush1.msra.mxu0 0.0
    %110 = vmatprep.subr.mxu0 0.0
    %111 = vmatpush1.msra.mxu0 0.0
    %112 = vmatprep.subr.mxu0 0.0
    %113 = vmatpush1.msra.mxu0 0.0
    %114 = vmatprep.mubr.f32.mxu0 0.0
    %115 = vmatmul.mubr.f32.gmra.mrb[0].mxu0 %v48
    %v116 = vpop.f32.mrb[0].mxu0
    %v117 = vadd.f32 %v44, %v116
    %v118 = vpop.f32.mrb[0].mxu0
    %119 = vdwg.mxu0
    %v120 = vmax.f32 %v117, 0.0
    %v122 = vlaneseq
    %v123 = vshrl.u32 %v122, 7
    %v124 = vsub.s32 0, %v123
    %v125 = vrot.slane %v37, %v124
    %vm127 = vcmask 130048
    %v129 = vsel %vm127, %v120, 0
    %131 = vmatprep.subr.mxu0 0.0
    %132 = vmatpush1.msra.mxu0 %v33
    %133 = vmatprep.subr.mxu0 0.0
    %134 = vmatpush1.msra.mxu0 %v34
    %135 = vmatprep.subr.mxu0 0.0
    %136 = vmatpush1.msra.mxu0 0.0
    %137 = vmatprep.subr.mxu0 0.0
    %138 = vmatpush1.msra.mxu0 0.0
    %139 = vmatprep.subr.mxu0 0.0
    %140 = vmatpush1.msra.mxu0 0.0
    %141 = vmatprep.subr.mxu0 0.0
    %142 = vmatpush1.msra.mxu0 0.0
    %143 = vmatprep.subr.mxu0 0.0
    %144 = vmatpush1.msra.mxu0 0.0
    %145 = vmatprep.subr.mxu0 0.0
    %146 = vmatpush1.msra.mxu0 0.0
    %147 = vmatprep.subr.mxu0 0.0
    %148 = vmatpush1.msra.mxu0 0.0
    %149 = vmatprep.subr.mxu0 0.0
    %150 = vmatpush1.msra.mxu0 0.0
    %151 = vmatprep.subr.mxu0 0.0
    %152 = vmatpush1.msra.mxu0 0.0
    %153 = vmatprep.subr.mxu0 0.0
    %154 = vmatpush1.msra.mxu0 0.0
    %155 = vmatprep.subr.mxu0 0.0
    %156 = vmatpush1.msra.mxu0 0.0
    %157 = vmatprep.subr.mxu0 0.0
    %158 = vmatpush1.msra.mxu0 0.0
    %159 = vmatprep.subr.mxu0 0.0
    %160 = vmatpush1.msra.mxu0 0.0
    %161 = vmatprep.subr.mxu0 0.0
    %162 = vmatpush1.msra.mxu0 0.0
    %163 = vmatprep.subr.mxu0 0.0
    %164 = vmatpush1.msra.mxu0 0.0
    %165 = vmatprep.subr.mxu0 0.0
    %166 = vmatpush1.msra.mxu0 0.0
    %167 = vmatprep.subr.mxu0 0.0
    %168 = vmatpush1.msra.mxu0 0.0
    %169 = vmatprep.subr.mxu0 0.0
    %170 = vmatpush1.msra.mxu0 0.0
    %171 = vmatprep.subr.mxu0 0.0
    %172 = vmatpush1.msra.mxu0 0.0
    %173 = vmatprep.subr.mxu0 0.0
    %174 = vmatpush1.msra.mxu0 0.0
    %175 = vmatprep.subr.mxu0 0.0
    %176 = vmatpush1.msra.mxu0 0.0
    %177 = vmatprep.subr.mxu0 0.0
    %178 = vmatpush1.msra.mxu0 0.0
    %179 = vmatprep.subr.mxu0 0.0
    %180 = vmatpush1.msra.mxu0 0.0
    %181 = vmatprep.subr.mxu0 0.0
    %182 = vmatpush1.msra.mxu0 0.0
    %183 = vmatprep.subr.mxu0 0.0
    %184 = vmatpush1.msra.mxu0 0.0
    %185 = vmatprep.subr.mxu0 0.0
    %186 = vmatpush1.msra.mxu0 0.0
    %187 = vmatprep.subr.mxu0 0.0
    %188 = vmatpush1.msra.mxu0 0.0
    %189 = vmatprep.subr.mxu0 0.0
    %190 = vmatpush1.msra.mxu0 0.0
    %191 = vmatprep.subr.mxu0 0.0
    %192 = vmatpush1.msra.mxu0 0.0
    %193 = vmatprep.subr.mxu0 0.0
    %194 = vmatpush1.msra.mxu0 0.0
    %195 = vmatprep.mubr.f32.mxu0 0.0
    %196 = vmatmul.mubr.f32.gmra.mrb[0].mxu0 %v129
    %v197 = vpop.f32.mrb[0].mxu0
    %v198 = vadd.f32 %v125, %v197
    %v199 = vpop.f32.mrb[0].mxu0
    %200 = vdwg.mxu0
    %v201 = vmax.f32 %v198, 0.0
    %203 = vset.pattern.permute.xlu0 0
    %204 = vperm.xlu0 %203, %v38
    %v205 = vpop.permute.xlu0 %204
    %v207 = vlaneseq
    %v208 = vshrl.u32 %v207, 7
    %v209 = vsub.s32 0, %v208
    %v210 = vrot.slane %v205, %v209
    %vm211 = vcmask 64512
    %v213 = vsel %vm211, %v35, 0
    %v216 = vsel %vm211, %v201, 0
    %218 = vmatprep.subr.mxu0 0.0
    %219 = vmatpush1.xpose.msra.mxu0 %v216
    %220 = vmatprep.subr.mxu0 0.0
    %221 = vmatpush1.xpose.msra.mxu0 0.0
    %222 = vmatprep.subr.mxu0 0.0
    %223 = vmatpush1.xpose.msra.mxu0 0.0
    %224 = vmatprep.subr.mxu0 0.0
    %225 = vmatpush1.xpose.msra.mxu0 0.0
    %226 = vmatprep.subr.mxu0 0.0
    %227 = vmatpush1.xpose.msra.mxu0 0.0
    %228 = vmatprep.subr.mxu0 0.0
    %229 = vmatpush1.xpose.msra.mxu0 0.0
    %230 = vmatprep.subr.mxu0 0.0
    %231 = vmatpush1.xpose.msra.mxu0 0.0
    %232 = vmatprep.subr.mxu0 0.0
    %233 = vmatpush1.xpose.msra.mxu0 0.0
    %234 = vmatprep.subr.mxu0 0.0
    %235 = vmatpush1.xpose.msra.mxu0 0.0
    %236 = vmatprep.subr.mxu0 0.0
    %237 = vmatpush1.xpose.msra.mxu0 0.0
    %238 = vmatprep.subr.mxu0 0.0
    %239 = vmatpush1.xpose.msra.mxu0 0.0
    %240 = vmatprep.subr.mxu0 0.0
    %241 = vmatpush1.xpose.msra.mxu0 0.0
    %242 = vmatprep.subr.mxu0 0.0
    %243 = vmatpush1.xpose.msra.mxu0 0.0
    %244 = vmatprep.subr.mxu0 0.0
    %245 = vmatpush1.xpose.msra.mxu0 0.0
    %246 = vmatprep.subr.mxu0 0.0
    %247 = vmatpush1.xpose.msra.mxu0 0.0
    %248 = vmatprep.subr.mxu0 0.0
    %249 = vmatpush1.xpose.msra.mxu0 0.0
    %250 = vmatprep.subr.mxu0 0.0
    %251 = vmatpush1.xpose.msra.mxu0 0.0
    %252 = vmatprep.subr.mxu0 0.0
    %253 = vmatpush1.xpose.msra.mxu0 0.0
    %254 = vmatprep.subr.mxu0 0.0
    %255 = vmatpush1.xpose.msra.mxu0 0.0
    %256 = vmatprep.subr.mxu0 0.0
    %257 = vmatpush1.xpose.msra.mxu0 0.0
    %258 = vmatprep.subr.mxu0 0.0
    %259 = vmatpush1.xpose.msra.mxu0 0.0
    %260 = vmatprep.subr.mxu0 0.0
    %261 = vmatpush1.xpose.msra.mxu0 0.0
    %262 = vmatprep.subr.mxu0 0.0
    %263 = vmatpush1.xpose.msra.mxu0 0.0
    %264 = vmatprep.subr.mxu0 0.0
    %265 = vmatpush1.xpose.msra.mxu0 0.0
    %266 = vmatprep.subr.mxu0 0.0
    %267 = vmatpush1.xpose.msra.mxu0 0.0
    %268 = vmatprep.subr.mxu0 0.0
    %269 = vmatpush1.xpose.msra.mxu0 0.0
    %270 = vmatprep.subr.mxu0 0.0
    %271 = vmatpush1.xpose.msra.mxu0 0.0
    %272 = vmatprep.subr.mxu0 0.0
    %273 = vmatpush1.xpose.msra.mxu0 0.0
    %274 = vmatprep.subr.mxu0 0.0
    %275 = vmatpush1.xpose.msra.mxu0 0.0
    %276 = vmatprep.subr.mxu0 0.0
    %277 = vmatpush1.xpose.msra.mxu0 0.0
    %278 = vmatprep.subr.mxu0 0.0
    %279 = vmatpush1.xpose.msra.mxu0 0.0
    %280 = vmatprep.subr.mxu0 0.0
    %281 = vmatpush1.xpose.msra.mxu0 0.0
    %282 = vmatprep.mubr.f32.mxu0 0.0
    %283 = vmatmul.mubr.f32.gmra.mrb[0].mxu0 %v213
    %v284 = vpop.f32.mrb[0].mxu0
    %v285 = vadd.f32 %v210, %v284
    %v286 = vpop.f32.mrb[0].mxu0
    %287 = vdwg.mxu0
    %vm288 = vcmask 57344
    %289 = vst.msk [vmem:[#allocation3] sm:$0x1] %vm288, %v285
    // Predicated region
    $region30: #{tpu_custom_call.1} parent=1 // pred_check
      _
    $region31: #{tpu_custom_call.1} parent=1 // pred_check_branch
      %291 = sbr.rel (0) target = $region33
    $region32: #{tpu_custom_call.1} parent=1 // pred_region
      %s293 = ssub.s32 16, 16
      %294 = vsyncadd [#allocation4], %s293
      %s296 = sshll.u32 [#allocation3], 4
      %s297 = int_to_ptr.vmem [resolvable:$true] %s296
      %299 = dma.vmem_to_hbm [thread:$0]  %s297, 16, %s7, [#allocation4]
    $region33: #{tpu_custom_call.1} parent=1 // pred_fallthru
      _
    // Predicated region
    $region34: #{tpu_custom_call.1} parent=1 // pred_check
      _
    $region35: #{tpu_custom_call.1} parent=1 // pred_check_branch
      %301 = sbr.rel (0) target = $region37
    $region36: #{tpu_custom_call.1} parent=1 // pred_region
      %302 = dma.done [#allocation4], 16
    $region37: #{tpu_custom_call.1} parent=1 // pred_fallthru
      _
    %303 = vsyncpa [#allocation4], 1

</llo_original>
